<compile_context>
chip_gen: v5e
topology: v5e:2x2
jax: 0.10.0
libtpu: 0.0.40
codegen_flags: <defaults>
</compile_context>

<pallas_src>
import functools
import math

import jax
import jax.numpy as jnp
from jax.experimental import pallas as pl
from jax.experimental.pallas import tpu as pltpu

IN = 15     # input features
H1 = 10     # fc1 output features
H2 = 5      # fc2 output features
OUT = 1     # fc3 output features
H1P = 16    # fc1 outputs padded to 8-sublane multiple; row 15 = constant-1 channel
TB_CAP = 16384  # max batch tile (lanes); keeps double-buffered VMEM use ~4 MiB


def _round_up(x, m):
    return ((x + m - 1) // m) * m


def _pick_tb(batch):
    """Batch tile: large enough to amortize the ~0.35 us per-grid-step overhead,
    a multiple of 128 lanes (legal BlockSpec, unmasked stores), >= 2 grid steps
    for large batches (both v7x TensorCores get work), capped so VMEM stays far
    below the 16 MiB scoped default on v5e."""
    bp = _round_up(batch, 128)
    if bp <= 1024:                 # tiny batch: one step; splitting only adds overhead
        return bp
    steps = max(2, math.ceil(batch / TB_CAP))
    return min(TB_CAP, _round_up(math.ceil(batch / steps), 512))


def mlp_kernel(xt_ref, w1p_ref, b1p_ref, w23p_ref, o_ref):
    # fc1: (H1P, IN) @ (IN, tb) -> (H1P, tb).  Batch rides the lane axis, so
    # both matmuls are natural MXU orientation and the store is lane-dense.
    # f32 accumulation regardless of the input dtype (f32 or bf16).
    h1t = jnp.dot(w1p_ref[...], xt_ref[...], preferred_element_type=jnp.float32)
    # f32 bias broadcast over lanes + ReLU.  Row H1P-1 has a zero weight row and
    # bias 1.0 -> constant-1 hidden channel carrying the fused fc2/fc3 bias.
    h1t = jnp.maximum(h1t + b1p_ref[...], 0.0)
    # Fused fc3(fc2(.)) as a single (8, H1P) @ (H1P, tb) contraction.
    res = jnp.dot(w23p_ref[...], h1t, preferred_element_type=jnp.float32)
    o_ref[...] = res[0:1, :].astype(o_ref.dtype)   # lane-dense (1, tb) row


@functools.partial(jax.jit, static_argnames=("tb",))
def mlp_forward_fm(xt, w1p, b1p, w23p, *, tb=None):
    """Feature-major path: xt has shape (15, B) (f32 or bf16). Returns (B, 1) f32.

    Reads x from HBM exactly once (no transpose / concat / pad materialization).
    """
    feat, batch = xt.shape
    if feat != IN:
        raise ValueError(f"expected feature-major input (15, B), got {xt.shape}")
    if tb is None:
        tb = _pick_tb(batch)
    grid_b = pl.cdiv(batch, tb)

    # MXU wants matching operand dtypes; bf16 activations also halve w1 traffic.
    w1p = w1p.astype(xt.dtype)

    out = pl.pallas_call(
        mlp_kernel,
        out_shape=jax.ShapeDtypeStruct((1, batch), jnp.float32),
        grid_spec=pltpu.PrefetchScalarGridSpec(
            num_scalar_prefetch=0,
            grid=(grid_b,),
            in_specs=[
                pl.BlockSpec((IN, tb), lambda i: (0, i)),    # streamed x tile
                pl.BlockSpec((H1P, IN), lambda i: (0, 0)),   # resident fc1 weights
                pl.BlockSpec((H1P, 1), lambda i: (0, 0)),    # resident fc1 bias (+const-1 row)
                pl.BlockSpec((8, H1P), lambda i: (0, 0)),    # resident fused fc2/fc3 slab
            ],
            out_specs=pl.BlockSpec((1, tb), lambda i: (0, i)),
        ),
        compiler_params=pltpu.CompilerParams(
            dimension_semantics=("parallel",),   # shards the batch grid across v7x's 2 TCs
        ),
    )(xt, w1p, b1p, w23p)
    return out.reshape(batch, OUT)


def mlp_forward(x, w1p, b1p, w23p, *, tb=None):
    """Batch-major convenience: x (B, 15). Pays exactly one extra HBM pass for the
    transpose; produce feature-major activations upstream and call mlp_forward_fm
    directly to avoid it."""
    return mlp_forward_fm(jnp.asarray(x).T, w1p, b1p, w23p, tb=tb)


def init_params(key):
    """PyTorch-style init, PyTorch layout: W (out, in), b (out,)."""
    def linear(k, fan_in, fan_out):
        kw, kb = jax.random.split(k)
        bound = 1.0 / jnp.sqrt(fan_in)
        w = jax.random.uniform(kw, (fan_out, fan_in), jnp.float32, -bound, bound)
        b = jax.random.uniform(kb, (fan_out,), jnp.float32, -bound, bound)
        return w, b

    k1, k2, k3 = jax.random.split(key, 3)
    w1, b1 = linear(k1, IN, H1)
    w2, b2 = linear(k2, H1, H2)
    w3, b3 = linear(k3, H2, OUT)
    return w1, b1, w2, b2, w3, b3


def pack_params(w1, b1, w2, b2, w3, b3):
    """PyTorch-layout params -> three small, padded, VMEM-resident slabs.

    w1p:  (16, 15) rows 0..9 = fc1 weight; rows 10..15 = 0.
    b1p:  (16, 1)  rows 0..9 = fc1 bias; row 15 = 1.0 (constant-1 hidden channel).
    w23p: (8, 16)  row 0 cols 0..9 = fused w3 @ w2; col 15 = fused bias w3 @ b2 + b3.
    """
    w1p = jnp.zeros((H1P, IN), jnp.float32).at[:H1, :].set(w1)
    b1p = (jnp.zeros((H1P, 1), jnp.float32)
           .at[:H1, 0].set(b1)
           .at[H1P - 1, 0].set(1.0))
    wf = w3 @ w2            # (1, H1)  fused fc2/fc3 weight
    bf = w3 @ b2 + b3       # (1,)     fused fc2/fc3 bias
    w23p = (jnp.zeros((8, H1P), jnp.float32)
            .at[0, :H1].set(wf[0])
            .at[0, H1P - 1].set(bf[0]))
    return w1p, b1p, w23p


def reference_forward(x, w1, b1, w2, b2, w3, b3):
    h1 = jnp.maximum(x @ w1.T + b1, 0.0)
    h2 = h1 @ w2.T + b2
    return h2 @ w3.T + b3


if __name__ == "__main__":
    key = jax.random.PRNGKey(0)
    kx, kp = jax.random.split(key)

    B = 300  # deliberately not a multiple of the batch tile (tests ragged blocks)
    x = jax.random.normal(kx, (B, IN), dtype=jnp.float32)  # (B, 15) as the nn.Module sees it
    xt = x.T                                               # feature-major "upstream" layout
    params = init_params(kp)
    w1, b1, w2, b2, w3, b3 = params
    ref = reference_forward(x, *params)

    w1p, b1p, w23p = pack_params(*params)

    # f32, auto tile (single grid step at this size).
    out = jax.block_until_ready(mlp_forward_fm(xt, w1p, b1p, w23p))
    assert out.shape == (B, OUT)
    assert jnp.allclose(out, ref, atol=1e-4, rtol=1e-4)

    # f32, forced small tile -> multi-step "parallel" grid with a ragged last block.
    out_g = jax.block_until_ready(mlp_forward_fm(xt, w1p, b1p, w23p, tb=128))
    assert jnp.allclose(out_g, ref, atol=1e-4, rtol=1e-4)

    # Batch-major convenience wrapper (pays one transpose pass, same results).
    out_bm = jax.block_until_ready(mlp_forward(x, w1p, b1p, w23p))
    assert jnp.allclose(out_bm, ref, atol=1e-4, rtol=1e-4)

    # bf16 activations (as an upstream producer would supply); f32 accumulation,
    # bias, ReLU and fused fc23.  Valid on v5e / v6e / v7x MXUs alike.
    out_bf = jax.block_until_ready(
        mlp_forward_fm(xt.astype(jnp.bfloat16), w1p, b1p, w23p))
    rd = lambda a: a.astype(jnp.bfloat16).astype(jnp.float32)
    ref_bf = reference_forward(rd(x), rd(w1), b1, w2, b2, w3, b3)
    assert out_bf.shape == (B, OUT)
    assert jnp.allclose(out_bf, ref_bf, atol=1e-2, rtol=1e-2)

    print("KERNEL_OK")
</pallas_src>

<mosaic_0001>
module attributes {stable_mosaic.version = 11 : i64} {
  func.func @mlp_kernel(%arg0: i32, %arg1: memref<15x384xf32, #tpu.memory_space<vmem>>, %arg2: memref<16x15xf32, #tpu.memory_space<vmem>>, %arg3: memref<16x1xf32, #tpu.memory_space<vmem>>, %arg4: memref<8x16xf32, #tpu.memory_space<vmem>>, %arg5: memref<1x384xf32, #tpu.memory_space<vmem>>) attributes {dimension_semantics = [#tpu.dimension_semantics<parallel>], iteration_bounds = array<i64: 1>, scalar_prefetch = 0 : i64, scratch_operands = 0 : i64, tpu.core_type = #tpu.core_type<tc>, window_params = [{transform_indices = @transform_0, window_bounds = array<i64: 15, 384>}, {pipeline_mode = #tpu.pipeline_mode<synchronous>, transform_indices = @transform_1, window_bounds = array<i64: 16, 15>}, {pipeline_mode = #tpu.pipeline_mode<synchronous>, transform_indices = @transform_2, window_bounds = array<i64: 16, 1>}, {pipeline_mode = #tpu.pipeline_mode<synchronous>, transform_indices = @transform_3, window_bounds = array<i64: 8, 16>}, {transform_indices = @transform_4, window_bounds = array<i64: 1, 384>}]} {
    %c0 = arith.constant 0 : index
    %c0_0 = arith.constant 0 : index
    %0 = vector.load %arg2[%c0, %c0_0] : memref<16x15xf32, #tpu.memory_space<vmem>>, vector<16x15xf32>
    %c0_1 = arith.constant 0 : index
    %c0_2 = arith.constant 0 : index
    %1 = vector.load %arg1[%c0_1, %c0_2] : memref<15x384xf32, #tpu.memory_space<vmem>>, vector<15x384xf32>
    %cst = arith.constant dense<0.000000e+00> : vector<16x384xf32>
    %2 = tpu.matmul %0, %1, %cst {dimension_numbers = #tpu.dot_dimension_numbers<[1], [0], [0], [1], [0, 0, 1, 1], [], []>} : vector<16x15xf32>, vector<15x384xf32>, vector<16x384xf32> -> vector<16x384xf32>
    %c0_3 = arith.constant 0 : index
    %c0_4 = arith.constant 0 : index
    %3 = vector.load %arg3[%c0_3, %c0_4] : memref<16x1xf32, #tpu.memory_space<vmem>>, vector<16x1xf32>
    %4 = vector.broadcast %3 : vector<16x1xf32> to vector<16x384xf32>
    %5 = arith.addf %2, %4 : vector<16x384xf32>
    %cst_5 = arith.constant 0.000000e+00 : f32
    %6 = vector.broadcast %cst_5 : f32 to vector<16x384xf32>
    %7 = arith.maximumf %5, %6 : vector<16x384xf32>
    %c0_6 = arith.constant 0 : index
    %c0_7 = arith.constant 0 : index
    %8 = vector.load %arg4[%c0_6, %c0_7] : memref<8x16xf32, #tpu.memory_space<vmem>>, vector<8x16xf32>
    %cst_8 = arith.constant dense<0.000000e+00> : vector<8x384xf32>
    %9 = tpu.matmul %8, %7, %cst_8 {dimension_numbers = #tpu.dot_dimension_numbers<[1], [0], [0], [1], [0, 0, 1, 1], [], []>} : vector<8x16xf32>, vector<16x384xf32>, vector<8x384xf32> -> vector<8x384xf32>
    %10 = vector.extract_strided_slice %9 {offsets = [0, 0], sizes = [1, 384], strides = [1, 1]} : vector<8x384xf32> to vector<1x384xf32>
    %c0_9 = arith.constant 0 : index
    %c0_10 = arith.constant 0 : index
    %11 = vector.load %arg5[%c0_9, %c0_10] : memref<1x384xf32, #tpu.memory_space<vmem>>, vector<1x384xf32>
    tpu.vector_store %arg5[%c0_9, %c0_10], %10 {strides = array<i32>} : memref<1x384xf32, #tpu.memory_space<vmem>>, vector<1x384xf32>,
    return
  }
  func.func @transform_0(%arg0: i32) -> (i32, i32) {
    %c0_i32 = arith.constant 0 : i32
    %c0_i32_0 = arith.constant 0 : i32
    return %c0_i32, %arg0 : i32, i32
  }
  func.func @transform_1(%arg0: i32) -> (i32, i32) {
    %c0_i32 = arith.constant 0 : i32
    %c0_i32_0 = arith.constant 0 : i32
    %c0_i32_1 = arith.constant 0 : i32
    return %c0_i32, %c0_i32_0 : i32, i32
  }
  func.func @transform_2(%arg0: i32) -> (i32, i32) {
    %c0_i32 = arith.constant 0 : i32
    %c0_i32_0 = arith.constant 0 : i32
    %c0_i32_1 = arith.constant 0 : i32
    return %c0_i32, %c0_i32_0 : i32, i32
  }
  func.func @transform_3(%arg0: i32) -> (i32, i32) {
    %c0_i32 = arith.constant 0 : i32
    %c0_i32_0 = arith.constant 0 : i32
    %c0_i32_1 = arith.constant 0 : i32
    return %c0_i32, %c0_i32_0 : i32, i32
  }
  func.func @transform_4(%arg0: i32) -> (i32, i32) {
    %c0_i32 = arith.constant 0 : i32
    %c0_i32_0 = arith.constant 0 : i32
    return %c0_i32, %arg0 : i32, i32
  }
}

</mosaic_0001>

<llo_original>
// kernel: mlp_forward_fm.1
$region0: #{mlp_forward_fm.1}
  #allocation0 [shape = 'u32[]', space=smem, size = 0x4, offset = 0x4, fixed_abs, tag = 'smem constant byte address 0x4 - core index']
  #allocation1 [shape = 'u32[72,128]{1,0:T(1,128)}', space=vmem, size = 0x9000, scoped, tag = 'internal scratch']
  %s0 = inlined_call_operand.hbm [shape: f32[15,300], index: 0, kind: input, shape index: {}]
  %s1 = inlined_call_operand.vmem [shape: f32[16,15], index: 1, kind: input, shape index: {}]
  %s2 = inlined_call_operand.vmem [shape: f32[16,1], index: 2, kind: input, shape index: {}]
  %s3 = inlined_call_operand.hbm [shape: f32[8,16], index: 3, kind: input, shape index: {}]
  %s4 = inlined_call_operand.hbm [shape: f32[1,300], index: 4, kind: output, shape index: {}]
  %s5 = sld [smem:[#allocation0]]
  $region34: #{mlp_forward_fm.1} parent=0
    _
  %s7 = ssub.s32 1, %s5
  %s8 = scalar_select 0, %s7, %s5
  $region1: #{mlp_forward_fm.1} parent=0
    #allocation2 [shape = 'u8[24576]{0}', space=vmem, size = 0x6000, scoped, tag = 'input window, operand 0, single buffered']
    #allocation3 [shape = 's32[1]{0}', space=sflag, size = 0x4, scoped, tag = 'scoped memory for mlp_forward_fm.1']
    #allocation4 [shape = 's32[1]{0}', space=sflag, size = 0x4, scoped, tag = 'scoped memory for mlp_forward_fm.1']
    #allocation5 [shape = 'u8[4096]{0}', space=vmem, size = 0x1000, scoped, tag = 'input window, operand 3, single buffered']
    #allocation6 [shape = 's32[1]{0}', space=sflag, size = 0x4, scoped, tag = 'scoped memory for mlp_forward_fm.1']
    #allocation7 [shape = 'u8[1536]{0}', space=vmem, size = 0x800, scoped, tag = 'output window, operand 0, single buffered']
    %9 = vsyncpa [#allocation3], 0
    %10 = vsyncpa [#allocation6], 0
    %11 = vsyncpa [#allocation4], 0
    // Predicated region
    $region2: #{mlp_forward_fm.1} parent=1 // pred_check
      _
    $region3: #{mlp_forward_fm.1} parent=1 // pred_check_branch
      %13 = sbr.rel (0) target = $region5
    $region4: #{mlp_forward_fm.1} parent=1 // pred_region
      %15 = vsyncadd [#allocation3], 0
      %s16 = sshll.u32 %s0, 4
      %s17 = int_to_ptr.hbm [resolvable:$true] %s16
      %s18 = sshll.u32 [#allocation2], 4
      %s19 = int_to_ptr.vmem [resolvable:$true] %s18
      %24 = dma.hbm_to_vmem [thread:$0]  %s17, 768, %s19, [#allocation3], 384, 384, 24
    $region5: #{mlp_forward_fm.1} parent=1 // pred_fallthru
      _
    // Predicated region
    $region6: #{mlp_forward_fm.1} parent=1 // pred_check
      _
    $region7: #{mlp_forward_fm.1} parent=1 // pred_check_branch
      %26 = sbr.rel (0) target = $region9
    $region8: #{mlp_forward_fm.1} parent=1 // pred_region
      _
    $region9: #{mlp_forward_fm.1} parent=1 // pred_fallthru
      _
    // Predicated region
    $region10: #{mlp_forward_fm.1} parent=1 // pred_check
      _
    $region11: #{mlp_forward_fm.1} parent=1 // pred_check_branch
      %28 = sbr.rel (0) target = $region13
    $region12: #{mlp_forward_fm.1} parent=1 // pred_region
      _
    $region13: #{mlp_forward_fm.1} parent=1 // pred_fallthru
      _
    // Predicated region
    $region14: #{mlp_forward_fm.1} parent=1 // pred_check
      _
    $region15: #{mlp_forward_fm.1} parent=1 // pred_check_branch
      %30 = sbr.rel (0) target = $region17
    $region16: #{mlp_forward_fm.1} parent=1 // pred_region
      %32 = vsyncadd [#allocation6], 0
      %s34 = sshll.u32 %s3, 4
      %s35 = int_to_ptr.hbm [resolvable:$true] %s34
      %s36 = sshll.u32 [#allocation5], 4
      %s37 = int_to_ptr.vmem [resolvable:$true] %s36
      %39 = dma.hbm_to_vmem [thread:$0]  %s35, 128, %s37, [#allocation6]
    $region17: #{mlp_forward_fm.1} parent=1 // pred_fallthru
      _
    // Predicated region
    $region18: #{mlp_forward_fm.1} parent=1 // pred_check
      _
    $region19: #{mlp_forward_fm.1} parent=1 // pred_check_branch
      %41 = sbr.rel (0) target = $region21
    $region20: #{mlp_forward_fm.1} parent=1 // pred_region
      %43 = dma.done [#allocation3], 768
    $region21: #{mlp_forward_fm.1} parent=1 // pred_fallthru
      _
    // Predicated region
    $region22: #{mlp_forward_fm.1} parent=1 // pred_check
      _
    $region23: #{mlp_forward_fm.1} parent=1 // pred_check_branch
      %45 = sbr.rel (0) target = $region25
    $region24: #{mlp_forward_fm.1} parent=1 // pred_region
      %47 = dma.done [#allocation6], 128
    $region25: #{mlp_forward_fm.1} parent=1 // pred_fallthru
      _
    %v48 = vld [vmem:[%s1] sm:$0xff]
    %v49 = vld [vmem:[%s1 + $0x8] sm:$0xff]
    %v50 = vld [vmem:[#allocation2] sm:$0xff]
    %v51 = vld [vmem:[#allocation2 + $0x8] sm:$0xff]
    %v52 = vld [vmem:[#allocation2 + $0x10] sm:$0xff]
    %v53 = vld [vmem:[#allocation2 + $0x18] sm:$0x7f]
    %v54 = vld [vmem:[#allocation2 + $0x20] sm:$0x7f]
    %v55 = vld [vmem:[#allocation2 + $0x28] sm:$0x7f]
    %v56 = vld [vmem:[%s2] sm:$0xff]
    %v57 = vld [vmem:[%s2 + $0x8] sm:$0xff]
    %59 = vset.pattern.permute.xlu0 0
    %60 = vperm.xlu0 %59, %v56
    %v61 = vpop.permute.xlu0 %60
    %64 = vset.pattern.permute.xlu0 0
    %65 = vperm.xlu0 %64, %v57
    %v66 = vpop.permute.xlu0 %65
    %vm68 = vcmask 121856
    %v70 = vsel %vm68, %v48, 0
    %v73 = vsel %vm68, %v49, 0
    %vm75 = vcmask 1046528
    %v77 = vsel %vm75, %v53, 0
    %v80 = vsel %vm75, %v54, 0
    %v83 = vsel %vm75, %v55, 0
    %85 = vmatpush.msra.mxu0 0.0
    %86 = vmatpush.msra.mxu0 0.0
    %87 = vmatpush.msra.mxu0 0.0
    %88 = vmatpush.msra.mxu0 0.0
    %89 = vmatpush.msra.mxu0 0.0
    %90 = vmatpush.msra.mxu0 0.0
    %91 = vmatpush.msra.mxu0 0.0
    %92 = vmatpush.msra.mxu0 0.0
    %93 = vmatpush.msra.mxu0 0.0
    %94 = vmatpush.msra.mxu0 0.0
    %95 = vmatpush.msra.mxu0 0.0
    %96 = vmatpush.msra.mxu0 0.0
    %97 = vmatpush.msra.mxu0 0.0
    %98 = vmatpush.msra.mxu0 0.0
    %99 = vmatpush.msra.mxu0 %v77
    %100 = vmatpush.msra.mxu0 %v50
    %101 = vmatmul.f32.gmra.mxu0 %v70
    %v102 = vpop.f32.mrf.mxu0
    %v103 = vadd.f32 %v61, %v102
    %104 = vmatmul.f32.gmra.mxu0 %v73
    %v105 = vpop.f32.mrf.mxu0
    %v106 = vadd.f32 %v66, %v105
    %107 = vdwg.mxu0
    %108 = vmatpush.msra.mxu0 0.0
    %109 = vmatpush.msra.mxu0 0.0
    %110 = vmatpush.msra.mxu0 0.0
    %111 = vmatpush.msra.mxu0 0.0
    %112 = vmatpush.msra.mxu0 0.0
    %113 = vmatpush.msra.mxu0 0.0
    %114 = vmatpush.msra.mxu0 0.0
    %115 = vmatpush.msra.mxu0 0.0
    %116 = vmatpush.msra.mxu0 0.0
    %117 = vmatpush.msra.mxu0 0.0
    %118 = vmatpush.msra.mxu0 0.0
    %119 = vmatpush.msra.mxu0 0.0
    %120 = vmatpush.msra.mxu0 0.0
    %121 = vmatpush.msra.mxu0 0.0
    %122 = vmatpush.msra.mxu0 %v80
    %123 = vmatpush.msra.mxu0 %v51
    %124 = vmatmul.f32.gmra.mxu0 %v70
    %v125 = vpop.f32.mrf.mxu0
    %v126 = vadd.f32 %v61, %v125
    %127 = vmatmul.f32.gmra.mxu0 %v73
    %v128 = vpop.f32.mrf.mxu0
    %v129 = vadd.f32 %v66, %v128
    %130 = vdwg.mxu0
    %131 = vmatpush.msra.mxu0 0.0
    %132 = vmatpush.msra.mxu0 0.0
    %133 = vmatpush.msra.mxu0 0.0
    %134 = vmatpush.msra.mxu0 0.0
    %135 = vmatpush.msra.mxu0 0.0
    %136 = vmatpush.msra.mxu0 0.0
    %137 = vmatpush.msra.mxu0 0.0
    %138 = vmatpush.msra.mxu0 0.0
    %139 = vmatpush.msra.mxu0 0.0
    %140 = vmatpush.msra.mxu0 0.0
    %141 = vmatpush.msra.mxu0 0.0
    %142 = vmatpush.msra.mxu0 0.0
    %143 = vmatpush.msra.mxu0 0.0
    %144 = vmatpush.msra.mxu0 0.0
    %145 = vmatpush.msra.mxu0 %v83
    %146 = vmatpush.msra.mxu0 %v52
    %147 = vmatmul.f32.gmra.mxu0 %v70
    %v148 = vpop.f32.mrf.mxu0
    %v149 = vadd.f32 %v61, %v148
    %150 = vmatmul.f32.gmra.mxu0 %v73
    %v151 = vpop.f32.mrf.mxu0
    %v152 = vadd.f32 %v66, %v151
    %153 = vdwg.mxu0
    %v154 = vmax.f32 %v103, 0.0
    %v155 = vmax.f32 %v126, 0.0
    %v156 = vmax.f32 %v149, 0.0
    %v157 = vmax.f32 %v106, 0.0
    %v158 = vmax.f32 %v129, 0.0
    %v159 = vmax.f32 %v152, 0.0
    %v160 = vld [vmem:[#allocation5] sm:$0xff]
    %vm161 = vcmask 130048
    %v163 = vsel %vm161, %v160, 0
    %165 = vmatpush.msra.mxu0 0.0
    %166 = vmatpush.msra.mxu0 0.0
    %167 = vmatpush.msra.mxu0 0.0
    %168 = vmatpush.msra.mxu0 0.0
    %169 = vmatpush.msra.mxu0 0.0
    %170 = vmatpush.msra.mxu0 0.0
    %171 = vmatpush.msra.mxu0 0.0
    %172 = vmatpush.msra.mxu0 0.0
    %173 = vmatpush.msra.mxu0 0.0
    %174 = vmatpush.msra.mxu0 0.0
    %175 = vmatpush.msra.mxu0 0.0
    %176 = vmatpush.msra.mxu0 0.0
    %177 = vmatpush.msra.mxu0 0.0
    %178 = vmatpush.msra.mxu0 0.0
    %179 = vmatpush.msra.mxu0 %v157
    %180 = vmatpush.msra.mxu0 %v154
    %181 = vmatmul.f32.gmra.mxu0 %v163
    %v182 = vpop.f32.mrf.mxu0
    %v183 = vadd.f32 0.0, %v182
    %184 = vdwg.mxu0
    %185 = vmatpush.msra.mxu0 0.0
    %186 = vmatpush.msra.mxu0 0.0
    %187 = vmatpush.msra.mxu0 0.0
    %188 = vmatpush.msra.mxu0 0.0
    %189 = vmatpush.msra.mxu0 0.0
    %190 = vmatpush.msra.mxu0 0.0
    %191 = vmatpush.msra.mxu0 0.0
    %192 = vmatpush.msra.mxu0 0.0
    %193 = vmatpush.msra.mxu0 0.0
    %194 = vmatpush.msra.mxu0 0.0
    %195 = vmatpush.msra.mxu0 0.0
    %196 = vmatpush.msra.mxu0 0.0
    %197 = vmatpush.msra.mxu0 0.0
    %198 = vmatpush.msra.mxu0 0.0
    %199 = vmatpush.msra.mxu0 %v158
    %200 = vmatpush.msra.mxu0 %v155
    %201 = vmatmul.f32.gmra.mxu0 %v163
    %v202 = vpop.f32.mrf.mxu0
    %v203 = vadd.f32 0.0, %v202
    %204 = vdwg.mxu0
    %205 = vmatpush.msra.mxu0 0.0
    %206 = vmatpush.msra.mxu0 0.0
    %207 = vmatpush.msra.mxu0 0.0
    %208 = vmatpush.msra.mxu0 0.0
    %209 = vmatpush.msra.mxu0 0.0
    %210 = vmatpush.msra.mxu0 0.0
    %211 = vmatpush.msra.mxu0 0.0
    %212 = vmatpush.msra.mxu0 0.0
    %213 = vmatpush.msra.mxu0 0.0
    %214 = vmatpush.msra.mxu0 0.0
    %215 = vmatpush.msra.mxu0 0.0
    %216 = vmatpush.msra.mxu0 0.0
    %217 = vmatpush.msra.mxu0 0.0
    %218 = vmatpush.msra.mxu0 0.0
    %219 = vmatpush.msra.mxu0 %v159
    %220 = vmatpush.msra.mxu0 %v156
    %221 = vmatmul.f32.gmra.mxu0 %v163
    %v222 = vpop.f32.mrf.mxu0
    %v223 = vadd.f32 0.0, %v222
    %224 = vdwg.mxu0
    %v228 = vrot.slane %v203, 7
    %v229 = vrot.slane %v223, 6
    %vm230 = vcmask 1040384
    %v231 = vsel %vm230, %v183, %v228
    %vm232 = vcmask 1041408
    %v233 = vsel %vm232, %v231, %v229
    %v235 = vlaneseq
    %vm236 = vcmp.ge.s32.totalorder %v235, 0
    %vm237 = vcmp.lt.s32.totalorder %v235, 384
    %vm238 = vmand %vm236, %vm237
    %239 = vst.msk [vmem:[#allocation7] sm:$0x7] %vm238, %v233
    // Predicated region
    $region26: #{mlp_forward_fm.1} parent=1 // pred_check
      _
    $region27: #{mlp_forward_fm.1} parent=1 // pred_check_branch
      %241 = sbr.rel (0) target = $region29
    $region28: #{mlp_forward_fm.1} parent=1 // pred_region
      %243 = vsyncadd [#allocation4], 0
      %s245 = sshll.u32 [#allocation7], 4
      %s246 = int_to_ptr.vmem [resolvable:$true] %s245
      %s247 = sshll.u32 %s4, 4
      %s248 = int_to_ptr.hbm [resolvable:$true] %s247
      %250 = dma.vmem_to_hbm [thread:$0]  %s246, 48, %s248, [#allocation4]
    $region29: #{mlp_forward_fm.1} parent=1 // pred_fallthru
      _
    // Predicated region
    $region30: #{mlp_forward_fm.1} parent=1 // pred_check
      _
    $region31: #{mlp_forward_fm.1} parent=1 // pred_check_branch
      %252 = sbr.rel (0) target = $region33
    $region32: #{mlp_forward_fm.1} parent=1 // pred_region
      %254 = dma.done [#allocation4], 48
    $region33: #{mlp_forward_fm.1} parent=1 // pred_fallthru
      _
    %255 = vsyncpa [#allocation3], 1
    %256 = vsyncpa [#allocation6], 1
    %257 = vsyncpa [#allocation4], 1

</llo_original>
